<compile_context>
chip_gen: v7x
topology: tpu7x:2x2x1
jax: 0.10.0
libtpu: 0.0.40
codegen_flags: <defaults>
</compile_context>

<pallas_src>
import functools
import math

import jax
import jax.numpy as jnp
from jax.experimental import pallas as pl
from jax.experimental.pallas import tpu as pltpu


_MAX_TILE = 512  # multiple of 8 and 128; keeps double-buffered tiles << 32 MiB


def _round_up(x, m):
    return (x + m - 1) // m * m


def _node_tiling(n):
    """Tile/pad for the node dim (adj rows AND adj contraction dim)."""
    if n <= _MAX_TILE:
        t = _round_up(n, 8)          # block == full (padded) dim -> layout legal
        return t, t
    return _MAX_TILE, _round_up(n, _MAX_TILE)


def _feat_tiling(f):
    """Tile/pad for feature dims (lane dims): multiples of 128."""
    if f <= _MAX_TILE:
        t = _round_up(f, 128)
        return t, t
    return _MAX_TILE, _round_up(f, _MAX_TILE)


def _row_tiling(m):
    """Tile/pad for the folded (B * N_pad) row dim: multiples of 8."""
    if m <= _MAX_TILE:
        t = _round_up(m, 8)
        return t, t
    return _MAX_TILE, _round_up(m, _MAX_TILE)


def _mm_kernel(*refs, k_axis, has_bias):
    """Generic tiled matmul body: f32 VMEM accumulator, optional fused bias."""
    if has_bias:
        a_ref, b_ref, bias_ref, o_ref, acc_ref = refs
    else:
        a_ref, b_ref, o_ref, acc_ref = refs
        bias_ref = None

    k = pl.program_id(k_axis)

    @pl.when(k == 0)
    def _init():
        acc_ref[...] = jnp.zeros_like(acc_ref)

    acc_ref[...] += jnp.dot(a_ref[...], b_ref[...],
                            preferred_element_type=jnp.float32)

    @pl.when(k == pl.num_programs(k_axis) - 1)
    def _store():
        out = acc_ref[...]
        if has_bias:
            out = out + bias_ref[...]        # (1, TN) broadcasts over (TM, TN)
        o_ref[...] = out.astype(o_ref.dtype)


def _matmul_2d(a, b, bias2d, out_dtype, tm, tn, tk):
    """Tiled (M, K) @ (K, N) -> (M, N). Dims already padded to tile multiples."""
    m, k_dim = a.shape
    _, n = b.shape
    grid = (m // tm, n // tn, k_dim // tk)

    in_specs = [
        pl.BlockSpec((tm, tk), lambda i, j, k: (i, k)),
        pl.BlockSpec((tk, tn), lambda i, j, k: (k, j)),
    ]
    args = [a, b]
    has_bias = bias2d is not None
    if has_bias:
        in_specs.append(pl.BlockSpec((1, tn), lambda i, j, k: (0, j)))
        args.append(bias2d)

    flops = 2 * m * n * k_dim
    bytes_accessed = (a.size * a.dtype.itemsize + b.size * b.dtype.itemsize
                      + m * n * jnp.dtype(out_dtype).itemsize)

    return pl.pallas_call(
        functools.partial(_mm_kernel, k_axis=2, has_bias=has_bias),
        out_shape=jax.ShapeDtypeStruct((m, n), out_dtype),
        grid_spec=pltpu.PrefetchScalarGridSpec(
            num_scalar_prefetch=0,
            grid=grid,
            in_specs=in_specs,
            out_specs=pl.BlockSpec((tm, tn), lambda i, j, k: (i, j)),
            scratch_shapes=[pltpu.VMEM((tm, tn), jnp.float32)],
        ),
        compiler_params=pltpu.CompilerParams(
            dimension_semantics=("parallel", "parallel", "arbitrary"),
        ),
        cost_estimate=pl.CostEstimate(
            flops=flops, transcendentals=0, bytes_accessed=bytes_accessed),
    )(*args)


def _adj_matmul(adj, x3, bias2d, out_dtype, tm, tn, tk):
    """Tiled batched (Np, Np) @ (B, Np, F) -> (B, Np, F); adj shared across B."""
    n_p, _ = adj.shape
    b_dim, _, f = x3.shape
    grid = (b_dim, n_p // tm, f // tn, n_p // tk)

    in_specs = [
        pl.BlockSpec((tm, tk), lambda b, i, j, k: (i, k)),                    # adj
        pl.BlockSpec((pl.Squeezed(), tk, tn), lambda b, i, j, k: (b, k, j)),  # x
    ]
    args = [adj, x3]
    has_bias = bias2d is not None
    if has_bias:
        in_specs.append(pl.BlockSpec((1, tn), lambda b, i, j, k: (0, j)))
        args.append(bias2d)

    flops = 2 * b_dim * n_p * n_p * f
    bytes_accessed = (adj.size * adj.dtype.itemsize + x3.size * x3.dtype.itemsize
                      + b_dim * n_p * f * jnp.dtype(out_dtype).itemsize)

    return pl.pallas_call(
        functools.partial(_mm_kernel, k_axis=3, has_bias=has_bias),
        out_shape=jax.ShapeDtypeStruct((b_dim, n_p, f), out_dtype),
        grid_spec=pltpu.PrefetchScalarGridSpec(
            num_scalar_prefetch=0,
            grid=grid,
            in_specs=in_specs,
            out_specs=pl.BlockSpec((pl.Squeezed(), tm, tn),
                                   lambda b, i, j, k: (b, i, j)),
            scratch_shapes=[pltpu.VMEM((tm, tn), jnp.float32)],
        ),
        compiler_params=pltpu.CompilerParams(
            dimension_semantics=("parallel", "parallel", "parallel", "arbitrary"),
        ),
        cost_estimate=pl.CostEstimate(
            flops=flops, transcendentals=0, bytes_accessed=bytes_accessed),
    )(*args)


def graph_convolution(x, adj, weight, bias=None, *, compute_dtype=None):
    """Pallas implementation of GraphConvolution.forward.

    x: (B, N, F_in), adj: (N, N), weight: (F_in, F_out), bias: (1, 1, F_out)|None.
    compute_dtype: optional (e.g. jnp.bfloat16) dtype for the MXU operands;
    accumulation is always f32 and the result is returned in x.dtype.
    """
    b_sz, n, f_in = x.shape
    f_in_w, f_out = weight.shape
    assert f_in_w == f_in
    assert adj.shape == (n, n)
    out_dtype = x.dtype
    cdt = jnp.dtype(compute_dtype) if compute_dtype is not None else jnp.dtype(x.dtype)

    t_node, n_p = _node_tiling(n)
    tk_fin, f_in_p = _feat_tiling(f_in)
    tn_fout, f_out_p = _feat_tiling(f_out)

    # Zero padding is exact for this op (padded rows/cols contribute nothing).
    x_p = jnp.pad(x, ((0, 0), (0, n_p - n), (0, f_in_p - f_in))).astype(cdt)
    adj_p = jnp.pad(adj, ((0, n_p - n), (0, n_p - n))).astype(cdt)
    w_p = jnp.pad(weight, ((0, f_in_p - f_in), (0, f_out_p - f_out))).astype(cdt)
    bias2d = None
    if bias is not None:
        assert bias.shape == (1, 1, f_out)
        bias2d = jnp.pad(bias.reshape(1, f_out),
                         ((0, 0), (0, f_out_p - f_out))).astype(jnp.float32)

    m = b_sz * n_p
    tm_row, m_p = _row_tiling(m)

    def _pad_rows(a2d):
        return a2d if m_p == m else jnp.pad(a2d, ((0, m_p - m), (0, 0)))

    if f_out <= f_in:
        # adj @ (x @ W): cheaper (or equal) when F_out <= F_in.
        support = _matmul_2d(_pad_rows(x_p.reshape(m, f_in_p)), w_p,
                             bias2d=None, out_dtype=cdt,
                             tm=tm_row, tn=tn_fout, tk=tk_fin)
        support = support[:m].reshape(b_sz, n_p, f_out_p)
        out_p = _adj_matmul(adj_p, support, bias2d=bias2d, out_dtype=out_dtype,
                            tm=t_node, tn=tn_fout, tk=t_node)
    else:
        # (adj @ x) @ W: cheaper when F_out > F_in.
        t3 = _adj_matmul(adj_p, x_p, bias2d=None, out_dtype=cdt,
                         tm=t_node, tn=tk_fin, tk=t_node)
        out2d = _matmul_2d(_pad_rows(t3.reshape(m, f_in_p)), w_p,
                           bias2d=bias2d, out_dtype=out_dtype,
                           tm=tm_row, tn=tn_fout, tk=tk_fin)
        out_p = out2d[:m].reshape(b_sz, n_p, f_out_p)

    return out_p[:, :n, :f_out]


def init_params(key, in_features, out_features, use_bias=False):
    """Deterministic init matching GraphConvolution.reset_parameters."""
    stdv = 1.0 / math.sqrt(out_features)
    kw, kb = jax.random.split(key)
    weight = jax.random.uniform(kw, (in_features, out_features),
                                dtype=jnp.float32, minval=-stdv, maxval=stdv)
    bias = None
    if use_bias:
        bias = jax.random.uniform(kb, (1, 1, out_features),
                                  dtype=jnp.float32, minval=-stdv, maxval=stdv)
    return weight, bias


if __name__ == "__main__":
    key = jax.random.PRNGKey(0)
    k_x, k_adj, k_w, k_b = jax.random.split(key, 4)

    B, N = 2, 8

    def reference(xr, adjr, wr, br):
        s = jnp.einsum("bnf,fo->bno", xr, wr)
        o = jnp.einsum("mn,bno->bmo", adjr, s)
        return o if br is None else o + br

    adj = jax.random.uniform(k_adj, (N, N), dtype=jnp.float32)
    x32 = jax.random.normal(k_x, (B, N, 32), dtype=jnp.float32)

    # Case 1: f32, no bias, F_in == F_out (module default config).
    w, b = init_params(k_w, 32, 32, use_bias=False)
    out = jax.block_until_ready(graph_convolution(x32, adj, w, b))
    ref = reference(x32, adj, w, b)
    assert out.shape == (B, N, 32)
    assert jnp.allclose(out, ref, atol=1e-5, rtol=1e-5)

    # Case 2: f32, bias, F_out < F_in (adj @ (x @ W) association + fused bias).
    w, b = init_params(k_w, 64, 32, use_bias=True)
    x64 = jax.random.normal(k_x, (B, N, 64), dtype=jnp.float32)
    out = jax.block_until_ready(graph_convolution(x64, adj, w, b))
    ref = reference(x64, adj, w, b)
    assert jnp.allclose(out, ref, atol=1e-5, rtol=1e-5)

    # Case 3: bf16 compute dtype, bias, F_out > F_in ((adj @ x) @ W association).
    w, b = init_params(k_b, 32, 64, use_bias=True)
    out = jax.block_until_ready(
        graph_convolution(x32, adj, w, b, compute_dtype=jnp.bfloat16))
    ref = reference(x32, adj, w, b)
    assert jnp.allclose(out, ref, atol=5e-2, rtol=5e-2)

    print("KERNEL_OK")
</pallas_src>

<mosaic_0001>
module attributes {stable_mosaic.version = 11 : i64} {
  func.func @_mm_kernel(%arg0: i32, %arg1: i32, %arg2: i32, %arg3: memref<16x128xf32, #tpu.memory_space<vmem>>, %arg4: memref<128x128xf32, #tpu.memory_space<vmem>>, %arg5: memref<16x128xf32, #tpu.memory_space<vmem>>, %arg6: memref<16x128xf32, #tpu.memory_space<vmem>>) attributes {dimension_semantics = [#tpu.dimension_semantics<parallel>, #tpu.dimension_semantics<parallel>, #tpu.dimension_semantics<arbitrary>], iteration_bounds = array<i64: 1, 1, 1>, scalar_prefetch = 0 : i64, scratch_operands = 1 : i64, tpu.core_type = #tpu.core_type<tc>, window_params = [{transform_indices = @transform_0, window_bounds = array<i64: 16, 128>}, {transform_indices = @transform_1, window_bounds = array<i64: 128, 128>}, {transform_indices = @transform_2, window_bounds = array<i64: 16, 128>}]} {
    %c0_i32 = arith.constant 0 : i32
    %0 = arith.cmpi eq, %arg2, %c0_i32 : i32
    %1 = arith.extui %0 : i1 to i32
    %c0_i32_0 = arith.constant 0 : i32
    %2 = arith.cmpi ne, %1, %c0_i32_0 : i32
    scf.if %2 {
      %cst_10 = arith.constant 0.000000e+00 : f32
      %12 = vector.broadcast %cst_10 : f32 to vector<16x128xf32>
      %c0_11 = arith.constant 0 : index
      %c0_12 = arith.constant 0 : index
      %13 = vector.load %arg6[%c0_11, %c0_12] : memref<16x128xf32, #tpu.memory_space<vmem>>, vector<16x128xf32>
      tpu.vector_store %arg6[%c0_11, %c0_12], %12 {strides = array<i32>} : memref<16x128xf32, #tpu.memory_space<vmem>>, vector<16x128xf32>,
    } else {
    }
    %c0 = arith.constant 0 : index
    %c0_1 = arith.constant 0 : index
    %3 = vector.load %arg6[%c0, %c0_1] : memref<16x128xf32, #tpu.memory_space<vmem>>, vector<16x128xf32>
    %c0_2 = arith.constant 0 : index
    %c0_3 = arith.constant 0 : index
    %4 = vector.load %arg3[%c0_2, %c0_3] : memref<16x128xf32, #tpu.memory_space<vmem>>, vector<16x128xf32>
    %c0_4 = arith.constant 0 : index
    %c0_5 = arith.constant 0 : index
    %5 = vector.load %arg4[%c0_4, %c0_5] : memref<128x128xf32, #tpu.memory_space<vmem>>, vector<128x128xf32>
    %cst = arith.constant dense<0.000000e+00> : vector<16x128xf32>
    %6 = tpu.matmul %4, %5, %cst {dimension_numbers = #tpu.dot_dimension_numbers<[1], [0], [0], [1], [0, 0, 1, 1], [], []>} : vector<16x128xf32>, vector<128x128xf32>, vector<16x128xf32> -> vector<16x128xf32>
    %7 = arith.addf %3, %6 : vector<16x128xf32>
    %c0_6 = arith.constant 0 : index
    %c0_7 = arith.constant 0 : index
    %8 = vector.load %arg6[%c0_6, %c0_7] : memref<16x128xf32, #tpu.memory_space<vmem>>, vector<16x128xf32>
    tpu.vector_store %arg6[%c0_6, %c0_7], %7 {strides = array<i32>} : memref<16x128xf32, #tpu.memory_space<vmem>>, vector<16x128xf32>,
    %c0_i32_8 = arith.constant 0 : i32
    %9 = arith.cmpi eq, %arg2, %c0_i32_8 : i32
    %10 = arith.extui %9 : i1 to i32
    %c0_i32_9 = arith.constant 0 : i32
    %11 = arith.cmpi ne, %10, %c0_i32_9 : i32
    scf.if %11 {
      %c0_10 = arith.constant 0 : index
      %c0_11 = arith.constant 0 : index
      %12 = vector.load %arg6[%c0_10, %c0_11] : memref<16x128xf32, #tpu.memory_space<vmem>>, vector<16x128xf32>
      %c0_12 = arith.constant 0 : index
      %c0_13 = arith.constant 0 : index
      %13 = vector.load %arg5[%c0_12, %c0_13] : memref<16x128xf32, #tpu.memory_space<vmem>>, vector<16x128xf32>
      tpu.vector_store %arg5[%c0_12, %c0_13], %12 {strides = array<i32>} : memref<16x128xf32, #tpu.memory_space<vmem>>, vector<16x128xf32>,
    } else {
    }
    return
  }
  func.func @transform_0(%arg0: i32, %arg1: i32, %arg2: i32) -> (i32, i32) {
    %c0_i32 = arith.constant 0 : i32
    return %arg0, %arg2 : i32, i32
  }
  func.func @transform_1(%arg0: i32, %arg1: i32, %arg2: i32) -> (i32, i32) {
    %c0_i32 = arith.constant 0 : i32
    return %arg2, %arg1 : i32, i32
  }
  func.func @transform_2(%arg0: i32, %arg1: i32, %arg2: i32) -> (i32, i32) {
    %c0_i32 = arith.constant 0 : i32
    return %arg0, %arg1 : i32, i32
  }
}

</mosaic_0001>

<llo_original>
// kernel: tpu_custom_call.1
$region0: #{tpu_custom_call.1}
  #allocation0 [shape = 'u32[]', space=smem, size = 0x4, offset = 0x4, fixed_abs, tag = 'smem constant byte address 0x4 - core index']
  #allocation1 [shape = 'u32[144,128]{1,0:T(1,128)}', space=vmem, size = 0x12000, scoped, tag = 'internal scratch']
  #allocation2 [shape = 'f32[16,128]{1,0:T(8,128)}', space=vmem, size = 0x2000, scoped, tag = 'scratch operand']
  %s0 = inlined_call_operand.hbm [shape: f32[16,128], index: 0, kind: input, shape index: {}]
  %s1 = inlined_call_operand.hbm [shape: f32[128,128], index: 1, kind: input, shape index: {}]
  %s2 = inlined_call_operand.hbm [shape: f32[16,128], index: 2, kind: output, shape index: {}]
  %s3 = sld [smem:[#allocation0]]
  $region34: #{tpu_custom_call.1} parent=0
    _
  %s5 = ssub.s32 1, %s3
  %s6 = scalar_select 0, %s5, %s3
  $region1: #{tpu_custom_call.1} parent=0
    #allocation3 [shape = 'u8[8192]{0}', space=vmem, size = 0x2000, scoped, tag = 'input window, operand 0, single buffered']
    #allocation4 [shape = 's32[1]{0}', space=sflag, size = 0x4, scoped, tag = 'scoped memory for tpu_custom_call.1']
    #allocation5 [shape = 's32[1]{0}', space=sflag, size = 0x4, scoped, tag = 'scoped memory for tpu_custom_call.1']
    #allocation6 [shape = 'u8[65536]{0}', space=vmem, size = 0x10000, scoped, tag = 'input window, operand 1, single buffered']
    #allocation7 [shape = 's32[1]{0}', space=sflag, size = 0x4, scoped, tag = 'scoped memory for tpu_custom_call.1']
    #allocation8 [shape = 'u8[8192]{0}', space=vmem, size = 0x2000, scoped, tag = 'output window, operand 0, single buffered']
    %7 = vsyncpa [#allocation4], 0
    %8 = vsyncpa [#allocation7], 0
    %9 = vsyncpa [#allocation5], 0
    // Predicated region
    $region2: #{tpu_custom_call.1} parent=1 // pred_check
      _
    $region3: #{tpu_custom_call.1} parent=1 // pred_check_branch
      %11 = sbr.rel (0) target = $region5
    $region4: #{tpu_custom_call.1} parent=1 // pred_region
      %s13 = ssub.s32 256, 256
      %14 = vsyncadd [#allocation4], %s13
      %s15 = sshll.u32 [#allocation3], 4
      %s16 = int_to_ptr.vmem [resolvable:$true] %s15
      %21 = dma.hbm_to_vmem [thread:$0]  %s0, 256, %s16, [#allocation4], 128, 128, 8
    $region5: #{tpu_custom_call.1} parent=1 // pred_fallthru
      _
    // Predicated region
    $region6: #{tpu_custom_call.1} parent=1 // pred_check
      _
    $region7: #{tpu_custom_call.1} parent=1 // pred_check_branch
      %23 = sbr.rel (0) target = $region9
    $region8: #{tpu_custom_call.1} parent=1 // pred_region
      %s25 = ssub.s32 2048, 2048
      %26 = vsyncadd [#allocation7], %s25
      %s27 = sshll.u32 [#allocation6], 4
      %s28 = int_to_ptr.vmem [resolvable:$true] %s27
      %33 = dma.hbm_to_vmem [thread:$0]  %s1, 2048, %s28, [#allocation7], 128, 128, 8
    $region9: #{tpu_custom_call.1} parent=1 // pred_fallthru
      _
    // Predicated region
    $region10: #{tpu_custom_call.1} parent=1 // pred_check
      _
    $region11: #{tpu_custom_call.1} parent=1 // pred_check_branch
      %35 = sbr.rel (0) target = $region13
    $region12: #{tpu_custom_call.1} parent=1 // pred_region
      %36 = dma.done [#allocation4], 256
    $region13: #{tpu_custom_call.1} parent=1 // pred_fallthru
      _
    // Predicated region
    $region14: #{tpu_custom_call.1} parent=1 // pred_check
      _
    $region15: #{tpu_custom_call.1} parent=1 // pred_check_branch
      %38 = sbr.rel (0) target = $region17
    $region16: #{tpu_custom_call.1} parent=1 // pred_region
      %39 = dma.done [#allocation7], 2048
    $region17: #{tpu_custom_call.1} parent=1 // pred_fallthru
      _
    %p40 = scmp.eq.s32.totalorder 0, 0
    // Predicated region
    $region18: #{tpu_custom_call.1} parent=1 // pred_check
      %p41 = pneg %p40
    $region19: #{tpu_custom_call.1} parent=1 // pred_check_branch
      %43 = sbr.rel (%p41) target = $region21
    $region20: #{tpu_custom_call.1} parent=1 // pred_region
      %44 = vst [vmem:[#allocation2] sm:$0xff] 0.0
      %45 = vst [vmem:[#allocation2 + $0x8] sm:$0xff] 0.0
    $region21: #{tpu_custom_call.1} parent=1 // pred_fallthru
      _
    %v46 = vld [vmem:[#allocation2] sm:$0xff]
    %v47 = vld [vmem:[#allocation2 + $0x8] sm:$0xff]
    %v48 = vld [vmem:[#allocation3] sm:$0xff]
    %v49 = vld [vmem:[#allocation3 + $0x8] sm:$0xff]
    %v50 = vld [vmem:[#allocation6] sm:$0xff]
    %v51 = vld [vmem:[#allocation6 + $0x8] sm:$0xff]
    %v52 = vld [vmem:[#allocation6 + $0x10] sm:$0xff]
    %v53 = vld [vmem:[#allocation6 + $0x18] sm:$0xff]
    %v54 = vld [vmem:[#allocation6 + $0x20] sm:$0xff]
    %v55 = vld [vmem:[#allocation6 + $0x28] sm:$0xff]
    %v56 = vld [vmem:[#allocation6 + $0x30] sm:$0xff]
    %v57 = vld [vmem:[#allocation6 + $0x38] sm:$0xff]
    %v58 = vld [vmem:[#allocation6 + $0x40] sm:$0xff]
    %v59 = vld [vmem:[#allocation6 + $0x48] sm:$0xff]
    %v60 = vld [vmem:[#allocation6 + $0x50] sm:$0xff]
    %v61 = vld [vmem:[#allocation6 + $0x58] sm:$0xff]
    %v62 = vld [vmem:[#allocation6 + $0x60] sm:$0xff]
    %v63 = vld [vmem:[#allocation6 + $0x68] sm:$0xff]
    %v64 = vld [vmem:[#allocation6 + $0x70] sm:$0xff]
    %v65 = vld [vmem:[#allocation6 + $0x78] sm:$0xff]
    %66 = vmatprep.subr.mxu0 0.0
    %67 = vmatpush1.msra.mxu0 %v50
    %68 = vmatprep.subr.mxu0 0.0
    %69 = vmatpush1.msra.mxu0 %v51
    %70 = vmatprep.subr.mxu0 0.0
    %71 = vmatpush1.msra.mxu0 %v52
    %72 = vmatprep.subr.mxu0 0.0
    %73 = vmatpush1.msra.mxu0 %v53
    %74 = vmatprep.subr.mxu0 0.0
    %75 = vmatpush1.msra.mxu0 %v54
    %76 = vmatprep.subr.mxu0 0.0
    %77 = vmatpush1.msra.mxu0 %v55
    %78 = vmatprep.subr.mxu0 0.0
    %79 = vmatpush1.msra.mxu0 %v56
    %80 = vmatprep.subr.mxu0 0.0
    %81 = vmatpush1.msra.mxu0 %v57
    %82 = vmatprep.subr.mxu0 0.0
    %83 = vmatpush1.msra.mxu0 %v58
    %84 = vmatprep.subr.mxu0 0.0
    %85 = vmatpush1.msra.mxu0 %v59
    %86 = vmatprep.subr.mxu0 0.0
    %87 = vmatpush1.msra.mxu0 %v60
    %88 = vmatprep.subr.mxu0 0.0
    %89 = vmatpush1.msra.mxu0 %v61
    %90 = vmatprep.subr.mxu0 0.0
    %91 = vmatpush1.msra.mxu0 %v62
    %92 = vmatprep.subr.mxu0 0.0
    %93 = vmatpush1.msra.mxu0 %v63
    %94 = vmatprep.subr.mxu0 0.0
    %95 = vmatpush1.msra.mxu0 %v64
    %96 = vmatprep.subr.mxu0 0.0
    %97 = vmatpush1.msra.mxu0 %v65
    %98 = vmatprep.subr.mxu0 0.0
    %99 = vmatpush1.msra.mxu0 0.0
    %100 = vmatprep.subr.mxu0 0.0
    %101 = vmatpush1.msra.mxu0 0.0
    %102 = vmatprep.subr.mxu0 0.0
    %103 = vmatpush1.msra.mxu0 0.0
    %104 = vmatprep.subr.mxu0 0.0
    %105 = vmatpush1.msra.mxu0 0.0
    %106 = vmatprep.subr.mxu0 0.0
    %107 = vmatpush1.msra.mxu0 0.0
    %108 = vmatprep.subr.mxu0 0.0
    %109 = vmatpush1.msra.mxu0 0.0
    %110 = vmatprep.subr.mxu0 0.0
    %111 = vmatpush1.msra.mxu0 0.0
    %112 = vmatprep.subr.mxu0 0.0
    %113 = vmatpush1.msra.mxu0 0.0
    %114 = vmatprep.subr.mxu0 0.0
    %115 = vmatpush1.msra.mxu0 0.0
    %116 = vmatprep.subr.mxu0 0.0
    %117 = vmatpush1.msra.mxu0 0.0
    %118 = vmatprep.subr.mxu0 0.0
    %119 = vmatpush1.msra.mxu0 0.0
    %120 = vmatprep.subr.mxu0 0.0
    %121 = vmatpush1.msra.mxu0 0.0
    %122 = vmatprep.subr.mxu0 0.0
    %123 = vmatpush1.msra.mxu0 0.0
    %124 = vmatprep.subr.mxu0 0.0
    %125 = vmatpush1.msra.mxu0 0.0
    %126 = vmatprep.subr.mxu0 0.0
    %127 = vmatpush1.msra.mxu0 0.0
    %128 = vmatprep.subr.mxu0 0.0
    %129 = vmatpush1.msra.mxu0 0.0
    %130 = vmatprep.mubr.f32.mxu0 0.0
    %131 = vmatmul.mubr.f32.gmra.mrb[0].mxu0 %v48
    %v132 = vpop.f32.mrb[0].mxu0
    %v133 = vadd.f32 0.0, %v132
    %v134 = vpop.f32.mrb[0].mxu0
    %135 = vmatprep.mubr.f32.mxu0 0.0
    %136 = vmatmul.mubr.f32.gmra.mrb[0].mxu0 %v49
    %v137 = vpop.f32.mrb[0].mxu0
    %v138 = vadd.f32 0.0, %v137
    %v139 = vpop.f32.mrb[0].mxu0
    %140 = vdwg.mxu0
    %v141 = vadd.f32 %v46, %v133
    %v142 = vadd.f32 %v47, %v138
    %143 = vst [vmem:[#allocation2] sm:$0xff] %v141
    %144 = vst [vmem:[#allocation2 + $0x8] sm:$0xff] %v142
    // Predicated region
    $region22: #{tpu_custom_call.1} parent=1 // pred_check
      %p145 = pneg %p40
    $region23: #{tpu_custom_call.1} parent=1 // pred_check_branch
      %147 = sbr.rel (%p145) target = $region25
    $region24: #{tpu_custom_call.1} parent=1 // pred_region
      %v148 = vld [vmem:[#allocation2] sm:$0xff]
      %v149 = vld [vmem:[#allocation2 + $0x8] sm:$0xff]
      %150 = vst [vmem:[#allocation8] sm:$0xff] %v148
      %151 = vst [vmem:[#allocation8 + $0x8] sm:$0xff] %v149
    $region25: #{tpu_custom_call.1} parent=1 // pred_fallthru
      _
    // Predicated region
    $region26: #{tpu_custom_call.1} parent=1 // pred_check
      _
    $region27: #{tpu_custom_call.1} parent=1 // pred_check_branch
      %153 = sbr.rel (0) target = $region29
    $region28: #{tpu_custom_call.1} parent=1 // pred_region
      %s155 = ssub.s32 256, 256
      %156 = vsyncadd [#allocation5], %s155
      %s157 = sshll.u32 [#allocation8], 4
      %s158 = int_to_ptr.vmem [resolvable:$true] %s157
      %163 = dma.vmem_to_hbm [thread:$0]  %s158, 256, %s2, [#allocation5], 128, 128, 8
    $region29: #{tpu_custom_call.1} parent=1 // pred_fallthru
      _
    // Predicated region
    $region30: #{tpu_custom_call.1} parent=1 // pred_check
      _
    $region31: #{tpu_custom_call.1} parent=1 // pred_check_branch
      %165 = sbr.rel (0) target = $region33
    $region32: #{tpu_custom_call.1} parent=1 // pred_region
      %166 = dma.done [#allocation5], 256
    $region33: #{tpu_custom_call.1} parent=1 // pred_fallthru
      _
    %167 = vsyncpa [#allocation4], 1
    %168 = vsyncpa [#allocation7], 1
    %169 = vsyncpa [#allocation5], 1

</llo_original>
